<compile_context>
chip_gen: v5e
topology: v5e:2x2
jax: 0.10.0
libtpu: 0.0.40
codegen_flags: <defaults>
</compile_context>

<pallas_src>
import jax
import jax.numpy as jnp
from jax.experimental import pallas as pl
from jax.experimental.pallas import tpu as pltpu


# ---------------------------------------------------------------------------
# Fused kernel: all layers + readouts for a block of TB batch elements
# ---------------------------------------------------------------------------
def _make_fused_kernel(num_layers, inv_n, neg_slope=0.01):
    def kernel(adj_ref, h0_ref, *rest):
        out_ref = rest[-1]
        wb_refs = rest[:-1]            # [W0, b0, W1, b1, ...]

        adj = adj_ref[...]             # (TB, N, N)  f32
        h = h0_ref[...]                # (TB, N, C0) f32
        tb, n, _ = adj.shape

        pooled = []

        def pool(hh):
            # readout(x) = concat([global_max_pool, global_mean_pool], -1)
            pooled.append(jnp.max(hh, axis=1))           # (TB, C)  XLU sublane reduce
            pooled.append(jnp.sum(hh, axis=1) * inv_n)   # (TB, C)  sum * (1/N) on the VPU

        pool(h)                                          # readout of the raw input features
        for li in range(num_layers):
            w = wb_refs[2 * li][...]                     # (Cin, Cout) == torch weight.T
            b = wb_refs[2 * li + 1][...]                 # (1, Cout)
            cin, cout = w.shape
            # DenseGINConv (eps = 0, add_loop=True): agg = h + adj @ h   (batched MXU matmul)
            agg = jnp.einsum('bnm,bmc->bnc', adj, h,
                             preferred_element_type=jnp.float32) + h
            # nn.Linear: agg @ W + b  (flatten batch*node into one MXU matmul)
            z = jnp.dot(agg.reshape(tb * n, cin), w,
                        preferred_element_type=jnp.float32)
            z = z.reshape(tb, n, cout) + b[None, :, :]
            # nn.LeakyReLU() (default negative_slope = 0.01)
            h = jnp.where(z > 0, z, neg_slope * z)
            # nn.Dropout(p): identity in eval mode.
            # TODO(synk): training-mode dropout (random mask + 1/(1-p) rescale) not implemented.
            pool(h)

        # Single lane-dense store of the full readout row per batch element.
        out_ref[...] = jnp.concatenate(pooled, axis=-1).astype(out_ref.dtype)

    return kernel


def _pick_batch_tile(B, cap=64):
    """Batch-block size: whole batch if small, else the largest multiple-of-8 divisor <= cap."""
    if B <= 8:
        return B
    best = None
    t = 8
    while t <= min(B, cap):
        if B % t == 0:
            best = t
        t += 8
    return best if best is not None else B


# ---------------------------------------------------------------------------
# Full GNNsRDCat2 forward (one pallas_call)
# ---------------------------------------------------------------------------
def gnns_rdcat2_forward(x, params):
    """x: (B, N, N + n_inputs) f32; params: list of (W (Cin,Cout), b (Cout,))."""
    B, N, tot = x.shape
    n_inputs = tot - N
    adj = x[:, :, :N]
    h0 = x[:, :, N:]

    dims = [n_inputs] + [w.shape[1] for (w, _) in params]
    d_out = 2 * sum(dims)              # == self.dim
    num_layers = len(params)

    TB = _pick_batch_tile(B)
    grid = (B // TB,)

    wb_inputs = []
    wb_specs = []
    for (w, b) in params:
        cin, cout = w.shape
        wb_inputs.append(w.astype(jnp.float32))
        wb_specs.append(pl.BlockSpec((cin, cout), lambda i: (0, 0)))
        wb_inputs.append(b.reshape(1, cout).astype(jnp.float32))
        wb_specs.append(pl.BlockSpec((1, cout), lambda i: (0, 0)))

    kernel = _make_fused_kernel(num_layers, 1.0 / N)

    return pl.pallas_call(
        kernel,
        out_shape=jax.ShapeDtypeStruct((B, d_out), jnp.float32),
        grid=grid,
        in_specs=[
            pl.BlockSpec((TB, N, N), lambda i: (i, 0, 0)),         # adjacency block
            pl.BlockSpec((TB, N, n_inputs), lambda i: (i, 0, 0)),  # node-feature block
            *wb_specs,                                             # full weights/biases in VMEM
        ],
        out_specs=pl.BlockSpec((TB, d_out), lambda i: (i, 0)),     # lane-dense readout slab
        compiler_params=pltpu.CompilerParams(
            dimension_semantics=("parallel",),                     # batch axis -> megacore shardable
        ),
    )(adj, h0, *wb_inputs)


# ---------------------------------------------------------------------------
# Pure-JAX reference for correctness checking
# ---------------------------------------------------------------------------
def _reference_forward(x, params):
    B, N, _ = x.shape
    adj = x[:, :, :N]
    h = x[:, :, N:]
    xs = [h]
    for (w, b) in params:
        agg = jnp.einsum('bnm,bmc->bnc', adj, h) + h
        z = agg @ w + b
        h = jnp.where(z > 0, z, 0.01 * z)
        xs.append(h)
    outs = []
    for hh in xs:
        outs.append(jnp.max(hh, axis=1))
        outs.append(jnp.mean(hh, axis=1))
    return jnp.concatenate(outs, axis=-1)


if __name__ == "__main__":
    key = jax.random.PRNGKey(0)
    B, N, n_inputs = 2, 8, 16
    hidden = [32, 32]
    dims = [n_inputs] + hidden

    keys = jax.random.split(key, 2 + 2 * len(hidden))
    k_adj, k_x = keys[0], keys[1]
    k_params = keys[2:]

    # deterministic synthetic inputs: binary adjacency + gaussian node features
    adj = (jax.random.uniform(k_adj, (B, N, N)) > 0.5).astype(jnp.float32)
    feats = jax.random.normal(k_x, (B, N, n_inputs), dtype=jnp.float32)
    x = jnp.concatenate([adj, feats], axis=-1)          # (B, N, N + n_inputs)

    # deterministic parameter init (PyTorch Linear default: U(-1/sqrt(fan_in), +))
    params = []
    for i in range(len(hidden)):
        fan_in = dims[i]
        bound = 1.0 / (fan_in ** 0.5)
        w = jax.random.uniform(k_params[2 * i], (dims[i], dims[i + 1]),
                               minval=-bound, maxval=bound, dtype=jnp.float32)
        b = jax.random.uniform(k_params[2 * i + 1], (dims[i + 1],),
                               minval=-bound, maxval=bound, dtype=jnp.float32)
        params.append((w, b))

    out = gnns_rdcat2_forward(x, params)
    out = jax.block_until_ready(out)

    expected_dim = 2 * sum(dims)                         # self.dim = sum([n_inputs]+hidden)*2
    assert out.shape == (B, expected_dim), out.shape
    assert out.dtype == jnp.float32

    ref = _reference_forward(x, params)
    assert bool(jnp.allclose(out, ref, atol=1e-4, rtol=1e-4)), "mismatch vs reference"

    print("KERNEL_OK")
</pallas_src>

<mosaic_0001>
module attributes {stable_mosaic.version = 11 : i64} {
  func.func @kernel(%arg0: i32, %arg1: memref<2x8x8xf32, #tpu.memory_space<vmem>>, %arg2: memref<2x8x16xf32, #tpu.memory_space<vmem>>, %arg3: memref<16x32xf32, #tpu.memory_space<vmem>>, %arg4: memref<1x32xf32, #tpu.memory_space<vmem>>, %arg5: memref<32x32xf32, #tpu.memory_space<vmem>>, %arg6: memref<1x32xf32, #tpu.memory_space<vmem>>, %arg7: memref<2x160xf32, #tpu.memory_space<vmem>>) attributes {dimension_semantics = [#tpu.dimension_semantics<parallel>], iteration_bounds = array<i64: 1>, scalar_prefetch = 0 : i64, scratch_operands = 0 : i64, tpu.core_type = #tpu.core_type<tc>, window_params = [{transform_indices = @transform_0, window_bounds = array<i64: 2, 8, 8>}, {transform_indices = @transform_1, window_bounds = array<i64: 2, 8, 16>}, {pipeline_mode = #tpu.pipeline_mode<synchronous>, transform_indices = @transform_2, window_bounds = array<i64: 16, 32>}, {pipeline_mode = #tpu.pipeline_mode<synchronous>, transform_indices = @transform_3, window_bounds = array<i64: 1, 32>}, {pipeline_mode = #tpu.pipeline_mode<synchronous>, transform_indices = @transform_4, window_bounds = array<i64: 32, 32>}, {pipeline_mode = #tpu.pipeline_mode<synchronous>, transform_indices = @transform_5, window_bounds = array<i64: 1, 32>}, {transform_indices = @transform_6, window_bounds = array<i64: 2, 160>}]} {
    %c0 = arith.constant 0 : index
    %c0_0 = arith.constant 0 : index
    %c0_1 = arith.constant 0 : index
    %0 = vector.load %arg1[%c0, %c0_0, %c0_1] : memref<2x8x8xf32, #tpu.memory_space<vmem>>, vector<2x8x8xf32>
    %c0_2 = arith.constant 0 : index
    %c0_3 = arith.constant 0 : index
    %c0_4 = arith.constant 0 : index
    %1 = vector.load %arg2[%c0_2, %c0_3, %c0_4] : memref<2x8x16xf32, #tpu.memory_space<vmem>>, vector<2x8x16xf32>
    %cst = arith.constant dense<0xFF800000> : vector<2x16xf32>
    %2 = vector.multi_reduction <maximumf>, %1, %cst [1] : vector<2x8x16xf32> to vector<2x16xf32>
    %cst_5 = arith.constant dense<0.000000e+00> : vector<2x16xf32>
    %3 = vector.multi_reduction <add>, %1, %cst_5 [1] : vector<2x8x16xf32> to vector<2x16xf32>
    %cst_6 = arith.constant 1.250000e-01 : f32
    %4 = vector.broadcast %cst_6 : f32 to vector<2x16xf32>
    %5 = arith.mulf %3, %4 : vector<2x16xf32>
    %c0_7 = arith.constant 0 : index
    %c0_8 = arith.constant 0 : index
    %6 = vector.load %arg3[%c0_7, %c0_8] : memref<16x32xf32, #tpu.memory_space<vmem>>, vector<16x32xf32>
    %c0_9 = arith.constant 0 : index
    %c0_10 = arith.constant 0 : index
    %7 = vector.load %arg4[%c0_9, %c0_10] : memref<1x32xf32, #tpu.memory_space<vmem>>, vector<1x32xf32>
    "tpu.trace_start"() <{level = 10 : i32, message = "bnm,bmc->bnc"}> : () -> ()
    %cst_11 = arith.constant dense<0.000000e+00> : vector<2x8x16xf32>
    %8 = tpu.matmul %0, %1, %cst_11 {dimension_numbers = #tpu.dot_dimension_numbers<[2], [1], [1], [2], [0, 0, 0, 1, 1, 2], [0], [0]>} : vector<2x8x8xf32>, vector<2x8x16xf32>, vector<2x8x16xf32> -> vector<2x8x16xf32>
    "tpu.trace_stop"() : () -> ()
    %9 = arith.addf %8, %1 : vector<2x8x16xf32>
    %10 = vector.shape_cast %9 : vector<2x8x16xf32> to vector<16x16xf32>
    %cst_12 = arith.constant dense<0.000000e+00> : vector<16x32xf32>
    %11 = tpu.matmul %10, %6, %cst_12 {dimension_numbers = #tpu.dot_dimension_numbers<[1], [0], [0], [1], [0, 0, 1, 1], [], []>} : vector<16x16xf32>, vector<16x32xf32>, vector<16x32xf32> -> vector<16x32xf32>
    %12 = vector.shape_cast %11 : vector<16x32xf32> to vector<2x8x32xf32>
    %13 = vector.shape_cast %7 : vector<1x32xf32> to vector<1x1x32xf32>
    %14 = vector.broadcast %13 : vector<1x1x32xf32> to vector<2x8x32xf32>
    %15 = arith.addf %12, %14 : vector<2x8x32xf32>
    %cst_13 = arith.constant 0.000000e+00 : f32
    %16 = vector.broadcast %cst_13 : f32 to vector<2x8x32xf32>
    %17 = arith.cmpf ogt, %15, %16 : vector<2x8x32xf32>
    %cst_14 = arith.constant 0.00999999977 : f32
    %18 = vector.broadcast %cst_14 : f32 to vector<2x8x32xf32>
    %19 = arith.mulf %18, %15 : vector<2x8x32xf32>
    %20 = arith.select %17, %15, %19 : vector<2x8x32xi1>, vector<2x8x32xf32>
    %cst_15 = arith.constant dense<0xFF800000> : vector<2x32xf32>
    %21 = vector.multi_reduction <maximumf>, %20, %cst_15 [1] : vector<2x8x32xf32> to vector<2x32xf32>
    %cst_16 = arith.constant dense<0.000000e+00> : vector<2x32xf32>
    %22 = vector.multi_reduction <add>, %20, %cst_16 [1] : vector<2x8x32xf32> to vector<2x32xf32>
    %cst_17 = arith.constant 1.250000e-01 : f32
    %23 = vector.broadcast %cst_17 : f32 to vector<2x32xf32>
    %24 = arith.mulf %22, %23 : vector<2x32xf32>
    %c0_18 = arith.constant 0 : index
    %c0_19 = arith.constant 0 : index
    %25 = vector.load %arg5[%c0_18, %c0_19] : memref<32x32xf32, #tpu.memory_space<vmem>>, vector<32x32xf32>
    %c0_20 = arith.constant 0 : index
    %c0_21 = arith.constant 0 : index
    %26 = vector.load %arg6[%c0_20, %c0_21] : memref<1x32xf32, #tpu.memory_space<vmem>>, vector<1x32xf32>
    "tpu.trace_start"() <{level = 10 : i32, message = "bnm,bmc->bnc"}> : () -> ()
    %cst_22 = arith.constant dense<0.000000e+00> : vector<2x8x32xf32>
    %27 = tpu.matmul %0, %20, %cst_22 {dimension_numbers = #tpu.dot_dimension_numbers<[2], [1], [1], [2], [0, 0, 0, 1, 1, 2], [0], [0]>} : vector<2x8x8xf32>, vector<2x8x32xf32>, vector<2x8x32xf32> -> vector<2x8x32xf32>
    "tpu.trace_stop"() : () -> ()
    %28 = arith.addf %27, %20 : vector<2x8x32xf32>
    %29 = vector.shape_cast %28 : vector<2x8x32xf32> to vector<16x32xf32>
    %cst_23 = arith.constant dense<0.000000e+00> : vector<16x32xf32>
    %30 = tpu.matmul %29, %25, %cst_23 {dimension_numbers = #tpu.dot_dimension_numbers<[1], [0], [0], [1], [0, 0, 1, 1], [], []>} : vector<16x32xf32>, vector<32x32xf32>, vector<16x32xf32> -> vector<16x32xf32>
    %31 = vector.shape_cast %30 : vector<16x32xf32> to vector<2x8x32xf32>
    %32 = vector.shape_cast %26 : vector<1x32xf32> to vector<1x1x32xf32>
    %33 = vector.broadcast %32 : vector<1x1x32xf32> to vector<2x8x32xf32>
    %34 = arith.addf %31, %33 : vector<2x8x32xf32>
    %cst_24 = arith.constant 0.000000e+00 : f32
    %35 = vector.broadcast %cst_24 : f32 to vector<2x8x32xf32>
    %36 = arith.cmpf ogt, %34, %35 : vector<2x8x32xf32>
    %cst_25 = arith.constant 0.00999999977 : f32
    %37 = vector.broadcast %cst_25 : f32 to vector<2x8x32xf32>
    %38 = arith.mulf %37, %34 : vector<2x8x32xf32>
    %39 = arith.select %36, %34, %38 : vector<2x8x32xi1>, vector<2x8x32xf32>
    %cst_26 = arith.constant dense<0xFF800000> : vector<2x32xf32>
    %40 = vector.multi_reduction <maximumf>, %39, %cst_26 [1] : vector<2x8x32xf32> to vector<2x32xf32>
    %cst_27 = arith.constant dense<0.000000e+00> : vector<2x32xf32>
    %41 = vector.multi_reduction <add>, %39, %cst_27 [1] : vector<2x8x32xf32> to vector<2x32xf32>
    %cst_28 = arith.constant 1.250000e-01 : f32
    %42 = vector.broadcast %cst_28 : f32 to vector<2x32xf32>
    %43 = arith.mulf %41, %42 : vector<2x32xf32>
    %44 = tpu.concatenate %2, %5, %21, %24, %40, %43 in 1 : vector<2x16xf32>, vector<2x16xf32>, vector<2x32xf32>, vector<2x32xf32>, vector<2x32xf32>, vector<2x32xf32> -> vector<2x160xf32>
    %c0_29 = arith.constant 0 : index
    %c0_30 = arith.constant 0 : index
    %45 = vector.load %arg7[%c0_29, %c0_30] : memref<2x160xf32, #tpu.memory_space<vmem>>, vector<2x160xf32>
    tpu.vector_store %arg7[%c0_29, %c0_30], %44 {strides = array<i32>} : memref<2x160xf32, #tpu.memory_space<vmem>>, vector<2x160xf32>,
    return
  }
  func.func @transform_0(%arg0: i32) -> (i32, i32, i32) {
    %c0_i32 = arith.constant 0 : i32
    %c0_i32_0 = arith.constant 0 : i32
    %c0_i32_1 = arith.constant 0 : i32
    return %arg0, %c0_i32, %c0_i32_0 : i32, i32, i32
  }
  func.func @transform_1(%arg0: i32) -> (i32, i32, i32) {
    %c0_i32 = arith.constant 0 : i32
    %c0_i32_0 = arith.constant 0 : i32
    %c0_i32_1 = arith.constant 0 : i32
    return %arg0, %c0_i32, %c0_i32_0 : i32, i32, i32
  }
  func.func @transform_2(%arg0: i32) -> (i32, i32) {
    %c0_i32 = arith.constant 0 : i32
    %c0_i32_0 = arith.constant 0 : i32
    %c0_i32_1 = arith.constant 0 : i32
    return %c0_i32, %c0_i32_0 : i32, i32
  }
  func.func @transform_3(%arg0: i32) -> (i32, i32) {
    %c0_i32 = arith.constant 0 : i32
    %c0_i32_0 = arith.constant 0 : i32
    %c0_i32_1 = arith.constant 0 : i32
    return %c0_i32, %c0_i32_0 : i32, i32
  }
  func.func @transform_4(%arg0: i32) -> (i32, i32) {
    %c0_i32 = arith.constant 0 : i32
    %c0_i32_0 = arith.constant 0 : i32
    %c0_i32_1 = arith.constant 0 : i32
    return %c0_i32, %c0_i32_0 : i32, i32
  }
  func.func @transform_5(%arg0: i32) -> (i32, i32) {
    %c0_i32 = arith.constant 0 : i32
    %c0_i32_0 = arith.constant 0 : i32
    %c0_i32_1 = arith.constant 0 : i32
    return %c0_i32, %c0_i32_0 : i32, i32
  }
  func.func @transform_6(%arg0: i32) -> (i32, i32) {
    %c0_i32 = arith.constant 0 : i32
    %c0_i32_0 = arith.constant 0 : i32
    return %arg0, %c0_i32 : i32, i32
  }
}

</mosaic_0001>

<llo_original>
// kernel: tpu_custom_call.1
$region0: #{tpu_custom_call.1}
  #allocation0 [shape = 'u32[]', space=smem, size = 0x4, offset = 0x4, fixed_abs, tag = 'smem constant byte address 0x4 - core index']
  #allocation1 [shape = 'u32[72,128]{1,0:T(1,128)}', space=vmem, size = 0x9000, scoped, tag = 'internal scratch']
  %s0 = inlined_call_operand.hbm [shape: f32[2,8,8], index: 0, kind: input, shape index: {}]
  %s1 = inlined_call_operand.hbm [shape: f32[2,8,16], index: 1, kind: input, shape index: {}]
  %s2 = inlined_call_operand.hbm [shape: f32[16,32], index: 2, kind: input, shape index: {}]
  %s3 = inlined_call_operand.vmem [shape: f32[1,32], index: 3, kind: input, shape index: {}]
  %s4 = inlined_call_operand.hbm [shape: f32[32,32], index: 4, kind: input, shape index: {}]
  %s5 = inlined_call_operand.vmem [shape: f32[1,32], index: 5, kind: input, shape index: {}]
  %s6 = inlined_call_operand.hbm [shape: f32[2,160], index: 6, kind: output, shape index: {}]
  %s7 = sld [smem:[#allocation0]]
  $region50: #{tpu_custom_call.1} parent=0
    _
  %s9 = ssub.s32 1, %s7
  %s10 = scalar_select 0, %s9, %s7
  $region1: #{tpu_custom_call.1} parent=0
    #allocation2 [shape = 'u8[8192]{0}', space=vmem, size = 0x2000, scoped, tag = 'input window, operand 0, single buffered']
    #allocation3 [shape = 's32[1]{0}', space=sflag, size = 0x4, scoped, tag = 'scoped memory for tpu_custom_call.1']
    #allocation4 [shape = 's32[1]{0}', space=sflag, size = 0x4, scoped, tag = 'scoped memory for tpu_custom_call.1']
    #allocation5 [shape = 'u8[8192]{0}', space=vmem, size = 0x2000, scoped, tag = 'input window, operand 1, single buffered']
    #allocation6 [shape = 's32[1]{0}', space=sflag, size = 0x4, scoped, tag = 'scoped memory for tpu_custom_call.1']
    #allocation7 [shape = 'u8[8192]{0}', space=vmem, size = 0x2000, scoped, tag = 'input window, operand 2, single buffered']
    #allocation8 [shape = 'u8[16384]{0}', space=vmem, size = 0x4000, scoped, tag = 'input window, operand 4, single buffered']
    #allocation9 [shape = 's32[1]{0}', space=sflag, size = 0x4, scoped, tag = 'scoped memory for tpu_custom_call.1']
    #allocation10 [shape = 'u8[2048]{0}', space=vmem, size = 0x800, scoped, tag = 'output window, operand 0, single buffered']
    %11 = vsyncpa [#allocation3], 0
    %12 = vsyncpa [#allocation6], 0
    %13 = vsyncpa [#allocation9], 0
    %14 = vsyncpa [#allocation4], 0
    // Predicated region
    $region2: #{tpu_custom_call.1} parent=1 // pred_check
      _
    $region3: #{tpu_custom_call.1} parent=1 // pred_check_branch
      %16 = sbr.rel (0) target = $region5
    $region4: #{tpu_custom_call.1} parent=1 // pred_region
      %18 = vsyncadd [#allocation3], 0
      %s19 = sshll.u32 %s0, 4
      %s20 = int_to_ptr.hbm [resolvable:$true] %s19
      %s21 = sshll.u32 [#allocation2], 4
      %s22 = int_to_ptr.vmem [resolvable:$true] %s21
      %27 = dma.hbm_to_vmem [thread:$0]  %s20, 256, %s22, [#allocation3], 128, 128, 8
    $region5: #{tpu_custom_call.1} parent=1 // pred_fallthru
      _
    // Predicated region
    $region6: #{tpu_custom_call.1} parent=1 // pred_check
      _
    $region7: #{tpu_custom_call.1} parent=1 // pred_check_branch
      %29 = sbr.rel (0) target = $region9
    $region8: #{tpu_custom_call.1} parent=1 // pred_region
      %31 = vsyncadd [#allocation6], 0
      %s32 = sshll.u32 %s1, 4
      %s33 = int_to_ptr.hbm [resolvable:$true] %s32
      %s34 = sshll.u32 [#allocation5], 4
      %s35 = int_to_ptr.vmem [resolvable:$true] %s34
      %40 = dma.hbm_to_vmem [thread:$0]  %s33, 256, %s35, [#allocation6], 128, 128, 8
    $region9: #{tpu_custom_call.1} parent=1 // pred_fallthru
      _
    // Predicated region
    $region10: #{tpu_custom_call.1} parent=1 // pred_check
      _
    $region11: #{tpu_custom_call.1} parent=1 // pred_check_branch
      %42 = sbr.rel (0) target = $region13
    $region12: #{tpu_custom_call.1} parent=1 // pred_region
      %44 = vsyncadd [#allocation6], 0
      %s45 = sshll.u32 %s2, 4
      %s46 = int_to_ptr.hbm [resolvable:$true] %s45
      %s47 = sshll.u32 [#allocation7], 4
      %s48 = int_to_ptr.vmem [resolvable:$true] %s47
      %53 = dma.hbm_to_vmem [thread:$0]  %s46, 256, %s48, [#allocation6], 128, 128, 8
    $region13: #{tpu_custom_call.1} parent=1 // pred_fallthru
      _
    // Predicated region
    $region14: #{tpu_custom_call.1} parent=1 // pred_check
      _
    $region15: #{tpu_custom_call.1} parent=1 // pred_check_branch
      %55 = sbr.rel (0) target = $region17
    $region16: #{tpu_custom_call.1} parent=1 // pred_region
      _
    $region17: #{tpu_custom_call.1} parent=1 // pred_fallthru
      _
    // Predicated region
    $region18: #{tpu_custom_call.1} parent=1 // pred_check
      _
    $region19: #{tpu_custom_call.1} parent=1 // pred_check_branch
      %57 = sbr.rel (0) target = $region21
    $region20: #{tpu_custom_call.1} parent=1 // pred_region
      %59 = vsyncadd [#allocation9], 0
      %s60 = sshll.u32 %s4, 4
      %s61 = int_to_ptr.hbm [resolvable:$true] %s60
      %s62 = sshll.u32 [#allocation8], 4
      %s63 = int_to_ptr.vmem [resolvable:$true] %s62
      %68 = dma.hbm_to_vmem [thread:$0]  %s61, 512, %s63, [#allocation9], 128, 128, 8
    $region21: #{tpu_custom_call.1} parent=1 // pred_fallthru
      _
    // Predicated region
    $region22: #{tpu_custom_call.1} parent=1 // pred_check
      _
    $region23: #{tpu_custom_call.1} parent=1 // pred_check_branch
      %70 = sbr.rel (0) target = $region25
    $region24: #{tpu_custom_call.1} parent=1 // pred_region
      _
    $region25: #{tpu_custom_call.1} parent=1 // pred_fallthru
      _
    // Predicated region
    $region26: #{tpu_custom_call.1} parent=1 // pred_check
      _
    $region27: #{tpu_custom_call.1} parent=1 // pred_check_branch
      %72 = sbr.rel (0) target = $region29
    $region28: #{tpu_custom_call.1} parent=1 // pred_region
      %74 = dma.done [#allocation3], 256
    $region29: #{tpu_custom_call.1} parent=1 // pred_fallthru
      _
    // Predicated region
    $region30: #{tpu_custom_call.1} parent=1 // pred_check
      _
    $region31: #{tpu_custom_call.1} parent=1 // pred_check_branch
      %76 = sbr.rel (0) target = $region33
    $region32: #{tpu_custom_call.1} parent=1 // pred_region
      %78 = dma.done [#allocation6], 256
    $region33: #{tpu_custom_call.1} parent=1 // pred_fallthru
      _
    // Predicated region
    $region34: #{tpu_custom_call.1} parent=1 // pred_check
      _
    $region35: #{tpu_custom_call.1} parent=1 // pred_check_branch
      %80 = sbr.rel (0) target = $region37
    $region36: #{tpu_custom_call.1} parent=1 // pred_region
      %82 = dma.done [#allocation6], 256
    $region37: #{tpu_custom_call.1} parent=1 // pred_fallthru
      _
    // Predicated region
    $region38: #{tpu_custom_call.1} parent=1 // pred_check
      _
    $region39: #{tpu_custom_call.1} parent=1 // pred_check_branch
      %84 = sbr.rel (0) target = $region41
    $region40: #{tpu_custom_call.1} parent=1 // pred_region
      %86 = dma.done [#allocation9], 512
    $region41: #{tpu_custom_call.1} parent=1 // pred_fallthru
      _
    %v87 = vld [vmem:[#allocation2] sm:$0xff]
    %v88 = vld [vmem:[#allocation2 + $0x8] sm:$0xff]
    %v89 = vld [vmem:[#allocation5] sm:$0xff]
    %v90 = vld [vmem:[#allocation5 + $0x8] sm:$0xff]
    %vm91 = vcmask 130048
    %v92 = vsel %vm91, %v89, -inf
    %v93 = vrot.slane %v92, 4
    %v94 = vmax.f32 %v92, %v93
    %v95 = vrot.slane %v94, 2
    %v96 = vmax.f32 %v94, %v95
    %v97 = vrot.slane %v96, 1
    %v98 = vmax.f32 %v96, %v97
    %v99 = vsel %vm91, %v90, -inf
    %v100 = vrot.slane %v99, 4
    %v101 = vmax.f32 %v99, %v100
    %v102 = vrot.slane %v101, 2
    %v103 = vmax.f32 %v101, %v102
    %v104 = vrot.slane %v103, 1
    %v105 = vmax.f32 %v103, %v104
    %v106 = vsel %vm91, %v89, 0.0
    %v107 = vrot.slane %v106, 4
    %v108 = vadd.f32 %v106, %v107
    %v109 = vrot.slane %v108, 2
    %v110 = vadd.f32 %v108, %v109
    %v111 = vrot.slane %v110, 1
    %v112 = vadd.f32 %v110, %v111
    %v113 = vsel %vm91, %v90, 0.0
    %v114 = vrot.slane %v113, 4
    %v115 = vadd.f32 %v113, %v114
    %v116 = vrot.slane %v115, 2
    %v117 = vadd.f32 %v115, %v116
    %v118 = vrot.slane %v117, 1
    %v119 = vadd.f32 %v117, %v118
    %v120 = vmul.f32 %v112, 0.125
    %v121 = vmul.f32 %v119, 0.125
    %v122 = vld [vmem:[#allocation7] sm:$0xff]
    %v123 = vld [vmem:[#allocation7 + $0x8] sm:$0xff]
    %v124 = vld [vmem:[%s3] sm:$0x1]
    %vm125 = vcmask 64512
    %v127 = vsel %vm125, %v87, 0
    %129 = vmatpush.msra.mxu0 0.0
    %130 = vmatpush.msra.mxu0 0.0
    %131 = vmatpush.msra.mxu0 0.0
    %132 = vmatpush.msra.mxu0 0.0
    %133 = vmatpush.msra.mxu0 0.0
    %134 = vmatpush.msra.mxu0 0.0
    %135 = vmatpush.msra.mxu0 0.0
    %136 = vmatpush.msra.mxu0 0.0
    %137 = vmatpush.msra.mxu0 0.0
    %138 = vmatpush.msra.mxu0 0.0
    %139 = vmatpush.msra.mxu0 0.0
    %140 = vmatpush.msra.mxu0 0.0
    %141 = vmatpush.msra.mxu0 0.0
    %142 = vmatpush.msra.mxu0 0.0
    %143 = vmatpush.msra.mxu0 0.0
    %144 = vmatpush.msra.mxu0 %v89
    %145 = vmatmul.f32.gmra.mxu0 %v127
    %v146 = vpop.f32.mrf.mxu0
    %v147 = vadd.f32 %v89, %v146
    %148 = vdwg.mxu0
    %v150 = vsel %vm125, %v88, 0
    %152 = vmatpush.msra.mxu0 0.0
    %153 = vmatpush.msra.mxu0 0.0
    %154 = vmatpush.msra.mxu0 0.0
    %155 = vmatpush.msra.mxu0 0.0
    %156 = vmatpush.msra.mxu0 0.0
    %157 = vmatpush.msra.mxu0 0.0
    %158 = vmatpush.msra.mxu0 0.0
    %159 = vmatpush.msra.mxu0 0.0
    %160 = vmatpush.msra.mxu0 0.0
    %161 = vmatpush.msra.mxu0 0.0
    %162 = vmatpush.msra.mxu0 0.0
    %163 = vmatpush.msra.mxu0 0.0
    %164 = vmatpush.msra.mxu0 0.0
    %165 = vmatpush.msra.mxu0 0.0
    %166 = vmatpush.msra.mxu0 0.0
    %167 = vmatpush.msra.mxu0 %v90
    %168 = vmatmul.f32.gmra.mxu0 %v150
    %v169 = vpop.f32.mrf.mxu0
    %v170 = vadd.f32 %v90, %v169
    %171 = vdwg.mxu0
    %v173 = vsel %vm91, %v147, 0
    %v176 = vsel %vm91, %v170, 0
    %178 = vmatpush.msra.mxu0 0.0
    %179 = vmatpush.msra.mxu0 0.0
    %180 = vmatpush.msra.mxu0 0.0
    %181 = vmatpush.msra.mxu0 0.0
    %182 = vmatpush.msra.mxu0 0.0
    %183 = vmatpush.msra.mxu0 0.0
    %184 = vmatpush.msra.mxu0 0.0
    %185 = vmatpush.msra.mxu0 0.0
    %186 = vmatpush.msra.mxu0 0.0
    %187 = vmatpush.msra.mxu0 0.0
    %188 = vmatpush.msra.mxu0 0.0
    %189 = vmatpush.msra.mxu0 0.0
    %190 = vmatpush.msra.mxu0 0.0
    %191 = vmatpush.msra.mxu0 0.0
    %192 = vmatpush.msra.mxu0 %v123
    %193 = vmatpush.msra.mxu0 %v122
    %194 = vmatmul.f32.gmra.mxu0 %v173
    %v195 = vpop.f32.mrf.mxu0
    %v196 = vadd.f32 0.0, %v195
    %197 = vmatmul.f32.gmra.mxu0 %v176
    %v198 = vpop.f32.mrf.mxu0
    %v199 = vadd.f32 0.0, %v198
    %200 = vdwg.mxu0
    %v202 = vperm.slane %v124, 0
    %v204 = vadd.f32 %v196, %v202
    %v205 = vadd.f32 %v199, %v202
    %vm206 = vcmp.gt.f32.partialorder %v204, 0.0
    %vm207 = vcmp.gt.f32.partialorder %v205, 0.0
    %v208 = vmul.f32 %v204, 0.01
    %v209 = vmul.f32 %v205, 0.01
    %v210 = vsel %vm206, %v204, %v208
    %v211 = vsel %vm207, %v205, %v209
    %vm212 = vcmask 261120
    %v213 = vsel %vm212, %v210, -inf
    %v214 = vrot.slane %v213, 4
    %v215 = vmax.f32 %v213, %v214
    %v216 = vrot.slane %v215, 2
    %v217 = vmax.f32 %v215, %v216
    %v218 = vrot.slane %v217, 1
    %v219 = vmax.f32 %v217, %v218
    %v220 = vsel %vm212, %v211, -inf
    %v221 = vrot.slane %v220, 4
    %v222 = vmax.f32 %v220, %v221
    %v223 = vrot.slane %v222, 2
    %v224 = vmax.f32 %v222, %v223
    %v225 = vrot.slane %v224, 1
    %v226 = vmax.f32 %v224, %v225
    %v227 = vsel %vm212, %v210, 0.0
    %v228 = vrot.slane %v227, 4
    %v229 = vadd.f32 %v227, %v228
    %v230 = vrot.slane %v229, 2
    %v231 = vadd.f32 %v229, %v230
    %v232 = vrot.slane %v231, 1
    %v233 = vadd.f32 %v231, %v232
    %v234 = vsel %vm212, %v211, 0.0
    %v235 = vrot.slane %v234, 4
    %v236 = vadd.f32 %v234, %v235
    %v237 = vrot.slane %v236, 2
    %v238 = vadd.f32 %v236, %v237
    %v239 = vrot.slane %v238, 1
    %v240 = vadd.f32 %v238, %v239
    %v241 = vmul.f32 %v233, 0.125
    %v242 = vmul.f32 %v240, 0.125
    %v243 = vld [vmem:[#allocation8] sm:$0xff]
    %v244 = vld [vmem:[#allocation8 + $0x8] sm:$0xff]
    %v245 = vld [vmem:[#allocation8 + $0x10] sm:$0xff]
    %v246 = vld [vmem:[#allocation8 + $0x18] sm:$0xff]
    %v247 = vld [vmem:[%s5] sm:$0x1]
    %248 = vmatpush.msra.mxu0 0.0
    %249 = vmatpush.msra.mxu0 0.0
    %250 = vmatpush.msra.mxu0 0.0
    %251 = vmatpush.msra.mxu0 0.0
    %252 = vmatpush.msra.mxu0 0.0
    %253 = vmatpush.msra.mxu0 0.0
    %254 = vmatpush.msra.mxu0 0.0
    %255 = vmatpush.msra.mxu0 0.0
    %256 = vmatpush.msra.mxu0 0.0
    %257 = vmatpush.msra.mxu0 0.0
    %258 = vmatpush.msra.mxu0 0.0
    %259 = vmatpush.msra.mxu0 0.0
    %260 = vmatpush.msra.mxu0 0.0
    %261 = vmatpush.msra.mxu0 0.0
    %262 = vmatpush.msra.mxu0 0.0
    %263 = vmatpush.msra.mxu0 %v210
    %264 = vmatmul.f32.gmra.mxu0 %v127
    %v265 = vpop.f32.mrf.mxu0
    %v266 = vadd.f32 %v210, %v265
    %267 = vdwg.mxu0
    %268 = vmatpush.msra.mxu0 0.0
    %269 = vmatpush.msra.mxu0 0.0
    %270 = vmatpush.msra.mxu0 0.0
    %271 = vmatpush.msra.mxu0 0.0
    %272 = vmatpush.msra.mxu0 0.0
    %273 = vmatpush.msra.mxu0 0.0
    %274 = vmatpush.msra.mxu0 0.0
    %275 = vmatpush.msra.mxu0 0.0
    %276 = vmatpush.msra.mxu0 0.0
    %277 = vmatpush.msra.mxu0 0.0
    %278 = vmatpush.msra.mxu0 0.0
    %279 = vmatpush.msra.mxu0 0.0
    %280 = vmatpush.msra.mxu0 0.0
    %281 = vmatpush.msra.mxu0 0.0
    %282 = vmatpush.msra.mxu0 0.0
    %283 = vmatpush.msra.mxu0 %v211
    %284 = vmatmul.f32.gmra.mxu0 %v150
    %v285 = vpop.f32.mrf.mxu0
    %v286 = vadd.f32 %v211, %v285
    %287 = vdwg.mxu0
    %v289 = vsel %vm212, %v266, 0
    %v292 = vsel %vm212, %v286, 0
    %294 = vmatpush.msra.mxu0 0.0
    %295 = vmatpush.msra.mxu0 0.0
    %296 = vmatpush.msra.mxu0 0.0
    %297 = vmatpush.msra.mxu0 0.0
    %298 = vmatpush.msra.mxu0 0.0
    %299 = vmatpush.msra.mxu0 0.0
    %300 = vmatpush.msra.mxu0 0.0
    %301 = vmatpush.msra.mxu0 0.0
    %302 = vmatpush.msra.mxu0 0.0
    %303 = vmatpush.msra.mxu0 0.0
    %304 = vmatpush.msra.mxu0 0.0
    %305 = vmatpush.msra.mxu0 0.0
    %306 = vmatpush.msra.mxu0 %v246
    %307 = vmatpush.msra.mxu0 %v245
    %308 = vmatpush.msra.mxu0 %v244
    %309 = vmatpush.msra.mxu0 %v243
    %310 = vmatmul.f32.gmra.mxu0 %v289
    %v311 = vpop.f32.mrf.mxu0
    %v312 = vadd.f32 0.0, %v311
    %313 = vmatmul.f32.gmra.mxu0 %v292
    %v314 = vpop.f32.mrf.mxu0
    %v315 = vadd.f32 0.0, %v314
    %316 = vdwg.mxu0
    %v318 = vperm.slane %v247, 0
    %v320 = vadd.f32 %v312, %v318
    %v321 = vadd.f32 %v315, %v318
    %vm322 = vcmp.gt.f32.partialorder %v320, 0.0
    %vm323 = vcmp.gt.f32.partialorder %v321, 0.0
    %v324 = vmul.f32 %v320, 0.01
    %v325 = vmul.f32 %v321, 0.01
    %v326 = vsel %vm322, %v320, %v324
    %v327 = vsel %vm323, %v321, %v325
    %v328 = vsel %vm212, %v326, -inf
    %v329 = vrot.slane %v328, 4
    %v330 = vmax.f32 %v328, %v329
    %v331 = vrot.slane %v330, 2
    %v332 = vmax.f32 %v330, %v331
    %v333 = vrot.slane %v332, 1
    %v334 = vmax.f32 %v332, %v333
    %v335 = vsel %vm212, %v327, -inf
    %v336 = vrot.slane %v335, 4
    %v337 = vmax.f32 %v335, %v336
    %v338 = vrot.slane %v337, 2
    %v339 = vmax.f32 %v337, %v338
    %v340 = vrot.slane %v339, 1
    %v341 = vmax.f32 %v339, %v340
    %v342 = vsel %vm212, %v326, 0.0
    %v343 = vrot.slane %v342, 4
    %v344 = vadd.f32 %v342, %v343
    %v345 = vrot.slane %v344, 2
    %v346 = vadd.f32 %v344, %v345
    %v347 = vrot.slane %v346, 1
    %v348 = vadd.f32 %v346, %v347
    %v349 = vsel %vm212, %v327, 0.0
    %v350 = vrot.slane %v349, 4
    %v351 = vadd.f32 %v349, %v350
    %v352 = vrot.slane %v351, 2
    %v353 = vadd.f32 %v351, %v352
    %v354 = vrot.slane %v353, 1
    %v355 = vadd.f32 %v353, %v354
    %v356 = vmul.f32 %v348, 0.125
    %v357 = vmul.f32 %v355, 0.125
    %vm360 = vcmask 1041409
    %v361 = vsel %vm360, %v105, %v98
    %v365 = vsel %vm360, %v121, %v120
    %366 = vrot.lane.b32.xlu0 %v365, 16
    %v367 = vpop.permute.xlu0 %366
    %v371 = vsel %vm360, %v226, %v219
    %372 = vrot.lane.b32.xlu0 %v371, 32
    %v373 = vpop.permute.xlu0 %372
    %v377 = vsel %vm360, %v242, %v241
    %378 = vrot.lane.b32.xlu0 %v377, 64
    %v379 = vpop.permute.xlu0 %378
    %v383 = vsel %vm360, %v341, %v334
    %384 = vrot.lane.b32.xlu0 %v383, 96
    %v385 = vpop.permute.xlu0 %384
    %v389 = vsel %vm360, %v357, %v356
    %v390 = vsel %vm91, %v361, %v367
    %v391 = vsel %vm212, %v390, %v373
    %vm392 = vcmask 523264
    %v393 = vsel %vm392, %v391, %v379
    %vm394 = vcmask 785408
    %v395 = vsel %vm394, %v393, %v385
    %v397 = vrot.slane %v389, 6
    %vm398 = vcmask 1041408
    %v399 = vsel %vm398, %v395, %v397
    %vm401 = vcmask 257026
    %vm402 = vmor %vm401, %vm398
    %403 = vst.msk [vmem:[#allocation10] sm:$0xf] %vm402, %v399
    // Predicated region
    $region42: #{tpu_custom_call.1} parent=1 // pred_check
      _
    $region43: #{tpu_custom_call.1} parent=1 // pred_check_branch
      %405 = sbr.rel (0) target = $region45
    $region44: #{tpu_custom_call.1} parent=1 // pred_region
      %407 = vsyncadd [#allocation4], 0
      %s409 = sshll.u32 [#allocation10], 4
      %s410 = int_to_ptr.vmem [resolvable:$true] %s409
      %s411 = sshll.u32 %s6, 4
      %s412 = int_to_ptr.hbm [resolvable:$true] %s411
      %414 = dma.vmem_to_hbm [thread:$0]  %s410, 64, %s412, [#allocation4]
    $region45: #{tpu_custom_call.1} parent=1 // pred_fallthru
      _
    // Predicated region
    $region46: #{tpu_custom_call.1} parent=1 // pred_check
      _
    $region47: #{tpu_custom_call.1} parent=1 // pred_check_branch
      %416 = sbr.rel (0) target = $region49
    $region48: #{tpu_custom_call.1} parent=1 // pred_region
      %418 = dma.done [#allocation4], 64
    $region49: #{tpu_custom_call.1} parent=1 // pred_fallthru
      _
    %419 = vsyncpa [#allocation3], 1
    %420 = vsyncpa [#allocation6], 1
    %421 = vsyncpa [#allocation9], 1
    %422 = vsyncpa [#allocation4], 1

</llo_original>
